<compile_context>
chip_gen: v7x
topology: tpu7x:2x2x1
jax: 0.10.0
libtpu: 0.0.40
codegen_flags: <defaults>
</compile_context>

<pallas_src>
import functools
import math

import numpy as np
import jax
import jax.numpy as jnp
from jax.experimental import pallas as pl
from jax.experimental.pallas import tpu as pltpu


# ----------------------------------------------------------------------------
# Host-side operator construction (port of IDWT_2D.get_matrix()).
# ----------------------------------------------------------------------------
def make_idwt_matrices(input_height, input_width, band_low, band_high):
    """Port of IDWT_2D.get_matrix() (numpy, deterministic)."""
    band_length = len(band_low)
    assert band_length == len(band_high) and band_length % 2 == 0
    band_length_half = band_length // 2

    L1 = max(input_height, input_width)
    L = L1 // 2
    matrix_h = np.zeros((L, L1 + band_length - 2), dtype=np.float64)
    matrix_g = np.zeros((L1 - L, L1 + band_length - 2), dtype=np.float64)
    end = None if band_length_half == 1 else -band_length_half + 1

    index = 0
    for i in range(L):
        for j in range(band_length):
            matrix_h[i, index + j] = band_low[j]
        index += 2
    matrix_h_0 = matrix_h[0:input_height // 2, 0:input_height + band_length - 2]
    matrix_h_1 = matrix_h[0:input_width // 2, 0:input_width + band_length - 2]

    index = 0
    for i in range(L1 - L):
        for j in range(band_length):
            matrix_g[i, index + j] = band_high[j]
        index += 2
    matrix_g_0 = matrix_g[0:input_height - input_height // 2,
                          0:input_height + band_length - 2]
    matrix_g_1 = matrix_g[0:input_width - input_width // 2,
                          0:input_width + band_length - 2]

    matrix_h_0 = matrix_h_0[:, band_length_half - 1:end]
    matrix_h_1 = matrix_h_1[:, band_length_half - 1:end]
    matrix_h_1 = np.transpose(matrix_h_1)
    matrix_g_0 = matrix_g_0[:, band_length_half - 1:end]
    matrix_g_1 = matrix_g_1[:, band_length_half - 1:end]
    matrix_g_1 = np.transpose(matrix_g_1)

    # matrix_low_0: (H/2, H), matrix_low_1: (W, W/2),
    # matrix_high_0: (H - H/2, H), matrix_high_1: (W, W/2)
    return (matrix_h_0.astype(np.float32), matrix_h_1.astype(np.float32),
            matrix_g_0.astype(np.float32), matrix_g_1.astype(np.float32))


def build_fused_idwt_operator(input_height, input_width, band_low, band_high):
    """Fold the separable IDWT into one operator.

    Reference math (per image, LL unused):
        out = ml0^T @ LH @ mh1^T + mh0^T @ HL @ ml1^T + mh0^T @ HH @ mh1^T
    With x = [vec(LH) | vec(HL) | vec(HH)] (row-major) and out_flat = vec(out):
        out_flat = x @ W_total
        W_total  = [kron(ml0, mh1^T); kron(mh0, ml1^T); kron(mh0, mh1^T)]
    Shape: (3 * H2 * W2, H * W).
    """
    ml0, ml1, mh0, mh1 = make_idwt_matrices(
        input_height, input_width, band_low, band_high)
    w_total = np.concatenate(
        [np.kron(ml0, mh1.T),
         np.kron(mh0, ml1.T),
         np.kron(mh0, mh1.T)],
        axis=0).astype(np.float32)
    return w_total


@functools.lru_cache(maxsize=16)
def _cached_fused_operator(input_height, input_width, band_low, band_high,
                           dtype_name):
    """Device-resident fused operator, built/uploaded once per configuration."""
    w = build_fused_idwt_operator(input_height, input_width,
                                  list(band_low), list(band_high))
    return jax.device_put(jnp.asarray(w, dtype=jnp.dtype(dtype_name)))


# ----------------------------------------------------------------------------
# Kernel.
# ----------------------------------------------------------------------------
def _idwt_fused_kernel(lh_ref, hl_ref, hh_ref, w_ref, o_ref):
    # lh/hl/hh_ref: (TM, K1)      per-band flattened coefficient tiles
    # w_ref:        (3*K1, HW)    fused operator, VMEM-resident (constant block)
    # o_ref:        (TM, HW)      flattened output pixels (lane-dense)
    k1 = lh_ref.shape[1]
    acc = jnp.dot(lh_ref[...], w_ref[0:k1, :],
                  preferred_element_type=jnp.float32)
    acc = acc + jnp.dot(hl_ref[...], w_ref[k1:2 * k1, :],
                        preferred_element_type=jnp.float32)
    acc = acc + jnp.dot(hh_ref[...], w_ref[2 * k1:3 * k1, :],
                        preferred_element_type=jnp.float32)
    o_ref[...] = acc.astype(o_ref.dtype)


# ----------------------------------------------------------------------------
# Wrapper.
# ----------------------------------------------------------------------------
def _pick_tile(dim, candidates):
    for c in candidates:
        if dim % c == 0:
            return c
    return dim  # full extent (allowed even if not a multiple of 8)


def _tensorcores_per_chip():
    """Best-effort detection; 1 on v5e/v6e, 2 on v7x. Safe fallback = 1."""
    try:
        kind = jax.devices()[0].device_kind.lower()
        if "v7" in kind:
            return 2
    except Exception:
        pass
    return 1


def idwt_2d(LL, LH, HL, HH, band_low, band_high):
    """Matches IDWT_2D.forward semantics. Inputs: (N, C, H/2, W/2) each."""
    assert LL.ndim == LH.ndim == HL.ndim == HH.ndim == 4
    # Even H/W only: low- and high-band extents must match.
    assert LL.shape == LH.shape == HL.shape == HH.shape, (
        "only even H and W are supported (all four subbands must have the "
        "same shape)")
    N, C, H2, W2 = LH.shape
    H, W = 2 * H2, 2 * W2
    NC = N * C
    K1 = H2 * W2
    K = 3 * K1
    HW = H * W
    dtype = LH.dtype
    itemsize = jnp.dtype(dtype).itemsize

    # Device-resident fused operator (cached; data independent like get_matrix).
    w_dev = _cached_fused_operator(H, W, tuple(band_low), tuple(band_high),
                                   jnp.dtype(dtype).name)

    # Per-band inputs; reshape is contiguous (free).  LL intentionally unused.
    lh = LH.reshape(NC, K1)
    hl = HL.reshape(NC, K1)
    hh = HH.reshape(NC, K1)

    # --- Tile selection ------------------------------------------------------
    # Image-batched M tile; output tile is the full, lane-dense HW width.
    tm = _pick_tile(NC, (512, 256, 128, 64, 32, 16, 8))

    # Dtype-aware VMEM budget (12 MiB: fits v5e's 16 MiB scoped default and
    # v6e/v7x defaults).  W is counted double-buffered to stay conservative.
    budget = 12 << 20

    def vmem_bytes(tm_):
        return itemsize * (2 * (3 * tm_ * K1 + tm_ * HW) + 2 * K * HW)

    # The resident-W fused form must itself fit; otherwise a separable
    # two-stage kernel is required.
    # TODO(synk): separable two-stage IDWT kernel for large spatial sizes.
    assert 2 * K * HW * itemsize <= budget, (
        "fused IDWT operator too large for VMEM; use a separable kernel")

    while vmem_bytes(tm) > budget and tm > 8 and (tm // 2) % 8 == 0:
        tm //= 2

    # Only on multi-TensorCore chips (v7x): split along the image axis so both
    # cores get work while sharing the identical resident W block.
    n_tc = _tensorcores_per_chip()
    if n_tc > 1:
        while (NC // tm) < n_tc and tm >= 16 and (tm // 2) % 8 == 0:
            tm //= 2

    grid = (NC // tm,)

    out_flat = pl.pallas_call(
        _idwt_fused_kernel,
        out_shape=jax.ShapeDtypeStruct((NC, HW), dtype),
        grid_spec=pltpu.PrefetchScalarGridSpec(
            num_scalar_prefetch=0,
            grid=grid,
            in_specs=[
                pl.BlockSpec((tm, K1), lambda i: (i, 0)),   # LH
                pl.BlockSpec((tm, K1), lambda i: (i, 0)),   # HL
                pl.BlockSpec((tm, K1), lambda i: (i, 0)),   # HH
                pl.BlockSpec((K, HW), lambda i: (0, 0)),    # W (fetched once)
            ],
            out_specs=pl.BlockSpec((tm, HW), lambda i: (i, 0)),
        ),
        compiler_params=pltpu.CompilerParams(
            dimension_semantics=("parallel",)),
    )(lh, hl, hh, w_dev)

    return out_flat.reshape(N, C, H, W)


# ----------------------------------------------------------------------------
# Pure-JAX reference (mirrors IDWTFunction_2D.forward).
# ----------------------------------------------------------------------------
def idwt_2d_ref(LL, LH, HL, HH, ml0, ml1, mh0, mh1):
    L = jnp.matmul(LH, mh1.T)
    H = jnp.matmul(HL, ml1.T) + jnp.matmul(HH, mh1.T)
    return jnp.matmul(ml0.T, L) + jnp.matmul(mh0.T, H)


if __name__ == "__main__":
    # Haar ('ch1.1'/'bior1.1') filters: dec_lo/dec_hi reversed as in __init__.
    s = 1.0 / math.sqrt(2.0)
    band_low = [s, s]        # reversed dec_lo
    band_high = [s, -s]      # reversed dec_hi

    N, C, H, W = 2, 4, 16, 16
    H2, W2 = H // 2, W // 2

    key = jax.random.PRNGKey(0)
    k1, k2, k3, k4 = jax.random.split(key, 4)
    LL = jax.random.normal(k1, (N, C, H2, W2), dtype=jnp.float32)
    LH = jax.random.normal(k2, (N, C, H2, W2), dtype=jnp.float32)
    HL = jax.random.normal(k3, (N, C, H2, W2), dtype=jnp.float32)
    HH = jax.random.normal(k4, (N, C, H2, W2), dtype=jnp.float32)

    out = idwt_2d(LL, LH, HL, HH, band_low, band_high)
    out = jax.block_until_ready(out)

    # Correctness check against the pure-JAX reference (f32 path; bf16 usage
    # would need a looser tolerance).
    ml0, ml1, mh0, mh1 = make_idwt_matrices(H, W, band_low, band_high)
    ref = idwt_2d_ref(LL, LH, HL, HH,
                      jnp.asarray(ml0), jnp.asarray(ml1),
                      jnp.asarray(mh0), jnp.asarray(mh1))
    assert out.shape == (N, C, H, W)
    np.testing.assert_allclose(np.asarray(out), np.asarray(ref),
                               rtol=1e-5, atol=1e-5)

    print("KERNEL_OK")
</pallas_src>

<mosaic_0001>
module attributes {stable_mosaic.version = 11 : i64} {
  func.func @_idwt_fused_kernel(%arg0: i32, %arg1: memref<8x64xf32, #tpu.memory_space<vmem>>, %arg2: memref<8x64xf32, #tpu.memory_space<vmem>>, %arg3: memref<8x64xf32, #tpu.memory_space<vmem>>, %arg4: memref<192x256xf32, #tpu.memory_space<vmem>>, %arg5: memref<8x256xf32, #tpu.memory_space<vmem>>) attributes {dimension_semantics = [#tpu.dimension_semantics<parallel>], iteration_bounds = array<i64: 1>, scalar_prefetch = 0 : i64, scratch_operands = 0 : i64, tpu.core_type = #tpu.core_type<tc>, window_params = [{transform_indices = @transform_0, window_bounds = array<i64: 8, 64>}, {transform_indices = @transform_1, window_bounds = array<i64: 8, 64>}, {transform_indices = @transform_2, window_bounds = array<i64: 8, 64>}, {pipeline_mode = #tpu.pipeline_mode<synchronous>, transform_indices = @transform_3, window_bounds = array<i64: 192, 256>}, {transform_indices = @transform_4, window_bounds = array<i64: 8, 256>}]} {
    %c0 = arith.constant 0 : index
    %c0_0 = arith.constant 0 : index
    %0 = vector.load %arg1[%c0, %c0_0] : memref<8x64xf32, #tpu.memory_space<vmem>>, vector<8x64xf32>
    %c0_1 = arith.constant 0 : index
    %c0_2 = arith.constant 0 : index
    %1 = vector.load %arg4[%c0_1, %c0_2] : memref<192x256xf32, #tpu.memory_space<vmem>>, vector<64x256xf32>
    %cst = arith.constant dense<0.000000e+00> : vector<8x256xf32>
    %2 = tpu.matmul %0, %1, %cst {dimension_numbers = #tpu.dot_dimension_numbers<[1], [0], [0], [1], [0, 0, 1, 1], [], []>} : vector<8x64xf32>, vector<64x256xf32>, vector<8x256xf32> -> vector<8x256xf32>
    %c0_3 = arith.constant 0 : index
    %c0_4 = arith.constant 0 : index
    %3 = vector.load %arg2[%c0_3, %c0_4] : memref<8x64xf32, #tpu.memory_space<vmem>>, vector<8x64xf32>
    %c64 = arith.constant 64 : index
    %c0_5 = arith.constant 0 : index
    %4 = vector.load %arg4[%c64, %c0_5] : memref<192x256xf32, #tpu.memory_space<vmem>>, vector<64x256xf32>
    %cst_6 = arith.constant dense<0.000000e+00> : vector<8x256xf32>
    %5 = tpu.matmul %3, %4, %cst_6 {dimension_numbers = #tpu.dot_dimension_numbers<[1], [0], [0], [1], [0, 0, 1, 1], [], []>} : vector<8x64xf32>, vector<64x256xf32>, vector<8x256xf32> -> vector<8x256xf32>
    %6 = arith.addf %2, %5 : vector<8x256xf32>
    %c0_7 = arith.constant 0 : index
    %c0_8 = arith.constant 0 : index
    %7 = vector.load %arg3[%c0_7, %c0_8] : memref<8x64xf32, #tpu.memory_space<vmem>>, vector<8x64xf32>
    %c128 = arith.constant 128 : index
    %c0_9 = arith.constant 0 : index
    %8 = vector.load %arg4[%c128, %c0_9] : memref<192x256xf32, #tpu.memory_space<vmem>>, vector<64x256xf32>
    %cst_10 = arith.constant dense<0.000000e+00> : vector<8x256xf32>
    %9 = tpu.matmul %7, %8, %cst_10 {dimension_numbers = #tpu.dot_dimension_numbers<[1], [0], [0], [1], [0, 0, 1, 1], [], []>} : vector<8x64xf32>, vector<64x256xf32>, vector<8x256xf32> -> vector<8x256xf32>
    %10 = arith.addf %6, %9 : vector<8x256xf32>
    %c0_11 = arith.constant 0 : index
    %c0_12 = arith.constant 0 : index
    %11 = vector.load %arg5[%c0_11, %c0_12] : memref<8x256xf32, #tpu.memory_space<vmem>>, vector<8x256xf32>
    tpu.vector_store %arg5[%c0_11, %c0_12], %10 {strides = array<i32>} : memref<8x256xf32, #tpu.memory_space<vmem>>, vector<8x256xf32>,
    return
  }
  func.func @transform_0(%arg0: i32) -> (i32, i32) {
    %c0_i32 = arith.constant 0 : i32
    %c0_i32_0 = arith.constant 0 : i32
    return %arg0, %c0_i32 : i32, i32
  }
  func.func @transform_1(%arg0: i32) -> (i32, i32) {
    %c0_i32 = arith.constant 0 : i32
    %c0_i32_0 = arith.constant 0 : i32
    return %arg0, %c0_i32 : i32, i32
  }
  func.func @transform_2(%arg0: i32) -> (i32, i32) {
    %c0_i32 = arith.constant 0 : i32
    %c0_i32_0 = arith.constant 0 : i32
    return %arg0, %c0_i32 : i32, i32
  }
  func.func @transform_3(%arg0: i32) -> (i32, i32) {
    %c0_i32 = arith.constant 0 : i32
    %c0_i32_0 = arith.constant 0 : i32
    %c0_i32_1 = arith.constant 0 : i32
    return %c0_i32, %c0_i32_0 : i32, i32
  }
  func.func @transform_4(%arg0: i32) -> (i32, i32) {
    %c0_i32 = arith.constant 0 : i32
    %c0_i32_0 = arith.constant 0 : i32
    return %arg0, %c0_i32 : i32, i32
  }
}

</mosaic_0001>

<llo_original>
// kernel: tpu_custom_call.1
$region0: #{tpu_custom_call.1}
  #allocation0 [shape = 'u32[]', space=smem, size = 0x4, offset = 0x4, fixed_abs, tag = 'smem constant byte address 0x4 - core index']
  #allocation1 [shape = 'u32[144,128]{1,0:T(1,128)}', space=vmem, size = 0x12000, scoped, tag = 'internal scratch']
  %s0 = inlined_call_operand.hbm [shape: f32[8,64], index: 0, kind: input, shape index: {}]
  %s1 = inlined_call_operand.hbm [shape: f32[8,64], index: 1, kind: input, shape index: {}]
  %s2 = inlined_call_operand.hbm [shape: f32[8,64], index: 2, kind: input, shape index: {}]
  %s3 = inlined_call_operand.hbm [shape: f32[192,256], index: 3, kind: input, shape index: {}]
  %s4 = inlined_call_operand.hbm [shape: f32[8,256], index: 4, kind: output, shape index: {}]
  %s5 = sld [smem:[#allocation0]]
  $region42: #{tpu_custom_call.1} parent=0
    _
  %s7 = ssub.s32 1, %s5
  %s8 = scalar_select 0, %s7, %s5
  $region1: #{tpu_custom_call.1} parent=0
    #allocation2 [shape = 'u8[4096]{0}', space=vmem, size = 0x1000, scoped, tag = 'input window, operand 0, single buffered']
    #allocation3 [shape = 's32[1]{0}', space=sflag, size = 0x4, scoped, tag = 'scoped memory for tpu_custom_call.1']
    #allocation4 [shape = 's32[1]{0}', space=sflag, size = 0x4, scoped, tag = 'scoped memory for tpu_custom_call.1']
    #allocation5 [shape = 'u8[4096]{0}', space=vmem, size = 0x1000, scoped, tag = 'input window, operand 1, single buffered']
    #allocation6 [shape = 's32[1]{0}', space=sflag, size = 0x4, scoped, tag = 'scoped memory for tpu_custom_call.1']
    #allocation7 [shape = 'u8[4096]{0}', space=vmem, size = 0x1000, scoped, tag = 'input window, operand 2, single buffered']
    #allocation8 [shape = 'u8[196608]{0}', space=vmem, size = 0x30000, scoped, tag = 'input window, operand 3, single buffered']
    #allocation9 [shape = 's32[1]{0}', space=sflag, size = 0x4, scoped, tag = 'scoped memory for tpu_custom_call.1']
    #allocation10 [shape = 'u8[8192]{0}', space=vmem, size = 0x2000, scoped, tag = 'output window, operand 0, single buffered']
    %9 = vsyncpa [#allocation3], 0
    %10 = vsyncpa [#allocation6], 0
    %11 = vsyncpa [#allocation9], 0
    %12 = vsyncpa [#allocation4], 0
    // Predicated region
    $region2: #{tpu_custom_call.1} parent=1 // pred_check
      _
    $region3: #{tpu_custom_call.1} parent=1 // pred_check_branch
      %14 = sbr.rel (0) target = $region5
    $region4: #{tpu_custom_call.1} parent=1 // pred_region
      %s16 = ssub.s32 128, 128
      %17 = vsyncadd [#allocation3], %s16
      %s19 = sshll.u32 [#allocation2], 4
      %s20 = int_to_ptr.vmem [resolvable:$true] %s19
      %22 = dma.hbm_to_vmem [thread:$0]  %s0, 128, %s20, [#allocation3]
    $region5: #{tpu_custom_call.1} parent=1 // pred_fallthru
      _
    // Predicated region
    $region6: #{tpu_custom_call.1} parent=1 // pred_check
      _
    $region7: #{tpu_custom_call.1} parent=1 // pred_check_branch
      %24 = sbr.rel (0) target = $region9
    $region8: #{tpu_custom_call.1} parent=1 // pred_region
      %s26 = ssub.s32 128, 128
      %27 = vsyncadd [#allocation6], %s26
      %s29 = sshll.u32 [#allocation5], 4
      %s30 = int_to_ptr.vmem [resolvable:$true] %s29
      %32 = dma.hbm_to_vmem [thread:$0]  %s1, 128, %s30, [#allocation6]
    $region9: #{tpu_custom_call.1} parent=1 // pred_fallthru
      _
    // Predicated region
    $region10: #{tpu_custom_call.1} parent=1 // pred_check
      _
    $region11: #{tpu_custom_call.1} parent=1 // pred_check_branch
      %34 = sbr.rel (0) target = $region13
    $region12: #{tpu_custom_call.1} parent=1 // pred_region
      %s36 = ssub.s32 128, 128
      %37 = vsyncadd [#allocation6], %s36
      %s39 = sshll.u32 [#allocation7], 4
      %s40 = int_to_ptr.vmem [resolvable:$true] %s39
      %42 = dma.hbm_to_vmem [thread:$0]  %s2, 128, %s40, [#allocation6]
    $region13: #{tpu_custom_call.1} parent=1 // pred_fallthru
      _
    // Predicated region
    $region14: #{tpu_custom_call.1} parent=1 // pred_check
      _
    $region15: #{tpu_custom_call.1} parent=1 // pred_check_branch
      %44 = sbr.rel (0) target = $region17
    $region16: #{tpu_custom_call.1} parent=1 // pred_region
      %s46 = ssub.s32 6144, 6144
      %47 = vsyncadd [#allocation9], %s46
      %s48 = sshll.u32 [#allocation8], 4
      %s49 = int_to_ptr.vmem [resolvable:$true] %s48
      %54 = dma.hbm_to_vmem [thread:$0]  %s3, 6144, %s49, [#allocation9], 256, 256, 16
    $region17: #{tpu_custom_call.1} parent=1 // pred_fallthru
      _
    // Predicated region
    $region18: #{tpu_custom_call.1} parent=1 // pred_check
      _
    $region19: #{tpu_custom_call.1} parent=1 // pred_check_branch
      %56 = sbr.rel (0) target = $region21
    $region20: #{tpu_custom_call.1} parent=1 // pred_region
      %57 = dma.done [#allocation3], 128
    $region21: #{tpu_custom_call.1} parent=1 // pred_fallthru
      _
    // Predicated region
    $region22: #{tpu_custom_call.1} parent=1 // pred_check
      _
    $region23: #{tpu_custom_call.1} parent=1 // pred_check_branch
      %59 = sbr.rel (0) target = $region25
    $region24: #{tpu_custom_call.1} parent=1 // pred_region
      %60 = dma.done [#allocation6], 128
    $region25: #{tpu_custom_call.1} parent=1 // pred_fallthru
      _
    // Predicated region
    $region26: #{tpu_custom_call.1} parent=1 // pred_check
      _
    $region27: #{tpu_custom_call.1} parent=1 // pred_check_branch
      %62 = sbr.rel (0) target = $region29
    $region28: #{tpu_custom_call.1} parent=1 // pred_region
      %63 = dma.done [#allocation6], 128
    $region29: #{tpu_custom_call.1} parent=1 // pred_fallthru
      _
    // Predicated region
    $region30: #{tpu_custom_call.1} parent=1 // pred_check
      _
    $region31: #{tpu_custom_call.1} parent=1 // pred_check_branch
      %65 = sbr.rel (0) target = $region33
    $region32: #{tpu_custom_call.1} parent=1 // pred_region
      %66 = dma.done [#allocation9], 6144
    $region33: #{tpu_custom_call.1} parent=1 // pred_fallthru
      _
    %v67 = vld [vmem:[#allocation2] sm:$0xff]
    %v68 = vld [vmem:[#allocation8] sm:$0xff]
    %v69 = vld [vmem:[#allocation8 + $0x8] sm:$0xff]
    %v70 = vld [vmem:[#allocation8 + $0x10] sm:$0xff]
    %v71 = vld [vmem:[#allocation8 + $0x18] sm:$0xff]
    %v72 = vld [vmem:[#allocation8 + $0x20] sm:$0xff]
    %v73 = vld [vmem:[#allocation8 + $0x28] sm:$0xff]
    %v74 = vld [vmem:[#allocation8 + $0x30] sm:$0xff]
    %v75 = vld [vmem:[#allocation8 + $0x38] sm:$0xff]
    %v76 = vld [vmem:[#allocation8 + $0x40] sm:$0xff]
    %v77 = vld [vmem:[#allocation8 + $0x48] sm:$0xff]
    %v78 = vld [vmem:[#allocation8 + $0x50] sm:$0xff]
    %v79 = vld [vmem:[#allocation8 + $0x58] sm:$0xff]
    %v80 = vld [vmem:[#allocation8 + $0x60] sm:$0xff]
    %v81 = vld [vmem:[#allocation8 + $0x68] sm:$0xff]
    %v82 = vld [vmem:[#allocation8 + $0x70] sm:$0xff]
    %v83 = vld [vmem:[#allocation8 + $0x78] sm:$0xff]
    %v84 = vld [vmem:[#allocation5] sm:$0xff]
    %v85 = vld [vmem:[#allocation8 + $0x80] sm:$0xff]
    %v86 = vld [vmem:[#allocation8 + $0x88] sm:$0xff]
    %v87 = vld [vmem:[#allocation8 + $0x90] sm:$0xff]
    %v88 = vld [vmem:[#allocation8 + $0x98] sm:$0xff]
    %v89 = vld [vmem:[#allocation8 + $0xa0] sm:$0xff]
    %v90 = vld [vmem:[#allocation8 + $0xa8] sm:$0xff]
    %v91 = vld [vmem:[#allocation8 + $0xb0] sm:$0xff]
    %v92 = vld [vmem:[#allocation8 + $0xb8] sm:$0xff]
    %v93 = vld [vmem:[#allocation8 + $0xc0] sm:$0xff]
    %v94 = vld [vmem:[#allocation8 + $0xc8] sm:$0xff]
    %v95 = vld [vmem:[#allocation8 + $0xd0] sm:$0xff]
    %v96 = vld [vmem:[#allocation8 + $0xd8] sm:$0xff]
    %v97 = vld [vmem:[#allocation8 + $0xe0] sm:$0xff]
    %v98 = vld [vmem:[#allocation8 + $0xe8] sm:$0xff]
    %v99 = vld [vmem:[#allocation8 + $0xf0] sm:$0xff]
    %v100 = vld [vmem:[#allocation8 + $0xf8] sm:$0xff]
    %vm101 = vcmask 523264
    %v103 = vsel %vm101, %v84, 0
    %105 = vmatprep.subr.mxu0 %v86
    %106 = vmatpush1.msra.mxu0 %v85
    %107 = vmatprep.subr.mxu0 %v88
    %108 = vmatpush1.msra.mxu0 %v87
    %109 = vmatprep.subr.mxu0 %v90
    %110 = vmatpush1.msra.mxu0 %v89
    %111 = vmatprep.subr.mxu0 %v92
    %112 = vmatpush1.msra.mxu0 %v91
    %113 = vmatprep.subr.mxu0 %v94
    %114 = vmatpush1.msra.mxu0 %v93
    %115 = vmatprep.subr.mxu0 %v96
    %116 = vmatpush1.msra.mxu0 %v95
    %117 = vmatprep.subr.mxu0 %v98
    %118 = vmatpush1.msra.mxu0 %v97
    %119 = vmatprep.subr.mxu0 %v100
    %120 = vmatpush1.msra.mxu0 %v99
    %121 = vmatprep.subr.mxu0 0.0
    %122 = vmatpush1.msra.mxu0 0.0
    %123 = vmatprep.subr.mxu0 0.0
    %124 = vmatpush1.msra.mxu0 0.0
    %125 = vmatprep.subr.mxu0 0.0
    %126 = vmatpush1.msra.mxu0 0.0
    %127 = vmatprep.subr.mxu0 0.0
    %128 = vmatpush1.msra.mxu0 0.0
    %129 = vmatprep.subr.mxu0 0.0
    %130 = vmatpush1.msra.mxu0 0.0
    %131 = vmatprep.subr.mxu0 0.0
    %132 = vmatpush1.msra.mxu0 0.0
    %133 = vmatprep.subr.mxu0 0.0
    %134 = vmatpush1.msra.mxu0 0.0
    %135 = vmatprep.subr.mxu0 0.0
    %136 = vmatpush1.msra.mxu0 0.0
    %137 = vmatprep.subr.mxu0 0.0
    %138 = vmatpush1.msra.mxu0 0.0
    %139 = vmatprep.subr.mxu0 0.0
    %140 = vmatpush1.msra.mxu0 0.0
    %141 = vmatprep.subr.mxu0 0.0
    %142 = vmatpush1.msra.mxu0 0.0
    %143 = vmatprep.subr.mxu0 0.0
    %144 = vmatpush1.msra.mxu0 0.0
    %145 = vmatprep.subr.mxu0 0.0
    %146 = vmatpush1.msra.mxu0 0.0
    %147 = vmatprep.subr.mxu0 0.0
    %148 = vmatpush1.msra.mxu0 0.0
    %149 = vmatprep.subr.mxu0 0.0
    %150 = vmatpush1.msra.mxu0 0.0
    %151 = vmatprep.subr.mxu0 0.0
    %152 = vmatpush1.msra.mxu0 0.0
    %153 = vmatprep.subr.mxu0 0.0
    %154 = vmatpush1.msra.mxu0 0.0
    %155 = vmatprep.subr.mxu0 0.0
    %156 = vmatpush1.msra.mxu0 0.0
    %157 = vmatprep.subr.mxu0 0.0
    %158 = vmatpush1.msra.mxu0 0.0
    %159 = vmatprep.subr.mxu0 0.0
    %160 = vmatpush1.msra.mxu0 0.0
    %161 = vmatprep.subr.mxu0 0.0
    %162 = vmatpush1.msra.mxu0 0.0
    %163 = vmatprep.subr.mxu0 0.0
    %164 = vmatpush1.msra.mxu0 0.0
    %165 = vmatprep.subr.mxu0 0.0
    %166 = vmatpush1.msra.mxu0 0.0
    %167 = vmatprep.subr.mxu0 0.0
    %168 = vmatpush1.msra.mxu0 0.0
    %169 = vmatprep.mubr.f32.mxu0 0.0
    %170 = vmatmul.mubr.f32.gmra.mrb[0].mxu0 %v103
    %v171 = vpop.f32.mrb[0].mxu0
    %v172 = vadd.f32 0.0, %v171
    %v173 = vpop.f32.mrb[0].mxu0
    %v174 = vadd.f32 0.0, %v173
    %175 = vdwg.mxu0
    %v177 = vsel %vm101, %v67, 0
    %179 = vmatprep.subr.mxu0 %v69
    %180 = vmatpush1.msra.mxu0 %v68
    %181 = vmatprep.subr.mxu0 %v71
    %182 = vmatpush1.msra.mxu0 %v70
    %183 = vmatprep.subr.mxu0 %v73
    %184 = vmatpush1.msra.mxu0 %v72
    %185 = vmatprep.subr.mxu0 %v75
    %186 = vmatpush1.msra.mxu0 %v74
    %187 = vmatprep.subr.mxu0 %v77
    %188 = vmatpush1.msra.mxu0 %v76
    %189 = vmatprep.subr.mxu0 %v79
    %190 = vmatpush1.msra.mxu0 %v78
    %191 = vmatprep.subr.mxu0 %v81
    %192 = vmatpush1.msra.mxu0 %v80
    %193 = vmatprep.subr.mxu0 %v83
    %194 = vmatpush1.msra.mxu0 %v82
    %195 = vmatprep.subr.mxu0 0.0
    %196 = vmatpush1.msra.mxu0 0.0
    %197 = vmatprep.subr.mxu0 0.0
    %198 = vmatpush1.msra.mxu0 0.0
    %199 = vmatprep.subr.mxu0 0.0
    %200 = vmatpush1.msra.mxu0 0.0
    %201 = vmatprep.subr.mxu0 0.0
    %202 = vmatpush1.msra.mxu0 0.0
    %203 = vmatprep.subr.mxu0 0.0
    %204 = vmatpush1.msra.mxu0 0.0
    %205 = vmatprep.subr.mxu0 0.0
    %206 = vmatpush1.msra.mxu0 0.0
    %207 = vmatprep.subr.mxu0 0.0
    %208 = vmatpush1.msra.mxu0 0.0
    %209 = vmatprep.subr.mxu0 0.0
    %210 = vmatpush1.msra.mxu0 0.0
    %211 = vmatprep.subr.mxu0 0.0
    %212 = vmatpush1.msra.mxu0 0.0
    %213 = vmatprep.subr.mxu0 0.0
    %214 = vmatpush1.msra.mxu0 0.0
    %215 = vmatprep.subr.mxu0 0.0
    %216 = vmatpush1.msra.mxu0 0.0
    %217 = vmatprep.subr.mxu0 0.0
    %218 = vmatpush1.msra.mxu0 0.0
    %219 = vmatprep.subr.mxu0 0.0
    %220 = vmatpush1.msra.mxu0 0.0
    %221 = vmatprep.subr.mxu0 0.0
    %222 = vmatpush1.msra.mxu0 0.0
    %223 = vmatprep.subr.mxu0 0.0
    %224 = vmatpush1.msra.mxu0 0.0
    %225 = vmatprep.subr.mxu0 0.0
    %226 = vmatpush1.msra.mxu0 0.0
    %227 = vmatprep.subr.mxu0 0.0
    %228 = vmatpush1.msra.mxu0 0.0
    %229 = vmatprep.subr.mxu0 0.0
    %230 = vmatpush1.msra.mxu0 0.0
    %231 = vmatprep.subr.mxu0 0.0
    %232 = vmatpush1.msra.mxu0 0.0
    %233 = vmatprep.subr.mxu0 0.0
    %234 = vmatpush1.msra.mxu0 0.0
    %235 = vmatprep.subr.mxu0 0.0
    %236 = vmatpush1.msra.mxu0 0.0
    %237 = vmatprep.subr.mxu0 0.0
    %238 = vmatpush1.msra.mxu0 0.0
    %239 = vmatprep.subr.mxu0 0.0
    %240 = vmatpush1.msra.mxu0 0.0
    %241 = vmatprep.subr.mxu0 0.0
    %242 = vmatpush1.msra.mxu0 0.0
    %243 = vmatprep.mubr.f32.mxu0 0.0
    %244 = vmatmul.mubr.f32.gmra.mrb[0].mxu0 %v177
    %v245 = vpop.f32.mrb[0].mxu0
    %v246 = vadd.f32 %v172, %v245
    %v247 = vpop.f32.mrb[0].mxu0
    %v248 = vadd.f32 %v174, %v247
    %249 = vdwg.mxu0
    %v250 = vld [vmem:[#allocation7] sm:$0xff]
    %v251 = vld [vmem:[#allocation8 + $0x100] sm:$0xff]
    %v252 = vld [vmem:[#allocation8 + $0x108] sm:$0xff]
    %v253 = vld [vmem:[#allocation8 + $0x110] sm:$0xff]
    %v254 = vld [vmem:[#allocation8 + $0x118] sm:$0xff]
    %v255 = vld [vmem:[#allocation8 + $0x120] sm:$0xff]
    %v256 = vld [vmem:[#allocation8 + $0x128] sm:$0xff]
    %v257 = vld [vmem:[#allocation8 + $0x130] sm:$0xff]
    %v258 = vld [vmem:[#allocation8 + $0x138] sm:$0xff]
    %v259 = vld [vmem:[#allocation8 + $0x140] sm:$0xff]
    %v260 = vld [vmem:[#allocation8 + $0x148] sm:$0xff]
    %v261 = vld [vmem:[#allocation8 + $0x150] sm:$0xff]
    %v262 = vld [vmem:[#allocation8 + $0x158] sm:$0xff]
    %v263 = vld [vmem:[#allocation8 + $0x160] sm:$0xff]
    %v264 = vld [vmem:[#allocation8 + $0x168] sm:$0xff]
    %v265 = vld [vmem:[#allocation8 + $0x170] sm:$0xff]
    %v266 = vld [vmem:[#allocation8 + $0x178] sm:$0xff]
    %v268 = vsel %vm101, %v250, 0
    %270 = vmatprep.subr.mxu0 %v252
    %271 = vmatpush1.msra.mxu0 %v251
    %272 = vmatprep.subr.mxu0 %v254
    %273 = vmatpush1.msra.mxu0 %v253
    %274 = vmatprep.subr.mxu0 %v256
    %275 = vmatpush1.msra.mxu0 %v255
    %276 = vmatprep.subr.mxu0 %v258
    %277 = vmatpush1.msra.mxu0 %v257
    %278 = vmatprep.subr.mxu0 %v260
    %279 = vmatpush1.msra.mxu0 %v259
    %280 = vmatprep.subr.mxu0 %v262
    %281 = vmatpush1.msra.mxu0 %v261
    %282 = vmatprep.subr.mxu0 %v264
    %283 = vmatpush1.msra.mxu0 %v263
    %284 = vmatprep.subr.mxu0 %v266
    %285 = vmatpush1.msra.mxu0 %v265
    %286 = vmatprep.subr.mxu0 0.0
    %287 = vmatpush1.msra.mxu0 0.0
    %288 = vmatprep.subr.mxu0 0.0
    %289 = vmatpush1.msra.mxu0 0.0
    %290 = vmatprep.subr.mxu0 0.0
    %291 = vmatpush1.msra.mxu0 0.0
    %292 = vmatprep.subr.mxu0 0.0
    %293 = vmatpush1.msra.mxu0 0.0
    %294 = vmatprep.subr.mxu0 0.0
    %295 = vmatpush1.msra.mxu0 0.0
    %296 = vmatprep.subr.mxu0 0.0
    %297 = vmatpush1.msra.mxu0 0.0
    %298 = vmatprep.subr.mxu0 0.0
    %299 = vmatpush1.msra.mxu0 0.0
    %300 = vmatprep.subr.mxu0 0.0
    %301 = vmatpush1.msra.mxu0 0.0
    %302 = vmatprep.subr.mxu0 0.0
    %303 = vmatpush1.msra.mxu0 0.0
    %304 = vmatprep.subr.mxu0 0.0
    %305 = vmatpush1.msra.mxu0 0.0
    %306 = vmatprep.subr.mxu0 0.0
    %307 = vmatpush1.msra.mxu0 0.0
    %308 = vmatprep.subr.mxu0 0.0
    %309 = vmatpush1.msra.mxu0 0.0
    %310 = vmatprep.subr.mxu0 0.0
    %311 = vmatpush1.msra.mxu0 0.0
    %312 = vmatprep.subr.mxu0 0.0
    %313 = vmatpush1.msra.mxu0 0.0
    %314 = vmatprep.subr.mxu0 0.0
    %315 = vmatpush1.msra.mxu0 0.0
    %316 = vmatprep.subr.mxu0 0.0
    %317 = vmatpush1.msra.mxu0 0.0
    %318 = vmatprep.subr.mxu0 0.0
    %319 = vmatpush1.msra.mxu0 0.0
    %320 = vmatprep.subr.mxu0 0.0
    %321 = vmatpush1.msra.mxu0 0.0
    %322 = vmatprep.subr.mxu0 0.0
    %323 = vmatpush1.msra.mxu0 0.0
    %324 = vmatprep.subr.mxu0 0.0
    %325 = vmatpush1.msra.mxu0 0.0
    %326 = vmatprep.subr.mxu0 0.0
    %327 = vmatpush1.msra.mxu0 0.0
    %328 = vmatprep.subr.mxu0 0.0
    %329 = vmatpush1.msra.mxu0 0.0
    %330 = vmatprep.subr.mxu0 0.0
    %331 = vmatpush1.msra.mxu0 0.0
    %332 = vmatprep.subr.mxu0 0.0
    %333 = vmatpush1.msra.mxu0 0.0
    %334 = vmatprep.mubr.f32.mxu0 0.0
    %335 = vmatmul.mubr.f32.gmra.mrb[0].mxu0 %v268
    %v336 = vpop.f32.mrb[0].mxu0
    %v337 = vadd.f32 0.0, %v336
    %v338 = vpop.f32.mrb[0].mxu0
    %v339 = vadd.f32 0.0, %v338
    %340 = vdwg.mxu0
    %v341 = vadd.f32 %v246, %v337
    %v342 = vadd.f32 %v248, %v339
    %343 = vst [vmem:[#allocation10] sm:$0xff] %v341
    %344 = vst [vmem:[#allocation10 + $0x8] sm:$0xff] %v342
    // Predicated region
    $region34: #{tpu_custom_call.1} parent=1 // pred_check
      _
    $region35: #{tpu_custom_call.1} parent=1 // pred_check_branch
      %346 = sbr.rel (0) target = $region37
    $region36: #{tpu_custom_call.1} parent=1 // pred_region
      %s348 = ssub.s32 256, 256
      %349 = vsyncadd [#allocation4], %s348
      %s351 = sshll.u32 [#allocation10], 4
      %s352 = int_to_ptr.vmem [resolvable:$true] %s351
      %354 = dma.vmem_to_hbm [thread:$0]  %s352, 256, %s4, [#allocation4]
    $region37: #{tpu_custom_call.1} parent=1 // pred_fallthru
      _
    // Predicated region
    $region38: #{tpu_custom_call.1} parent=1 // pred_check
      _
    $region39: #{tpu_custom_call.1} parent=1 // pred_check_branch
      %356 = sbr.rel (0) target = $region41
    $region40: #{tpu_custom_call.1} parent=1 // pred_region
      %357 = dma.done [#allocation4], 256
    $region41: #{tpu_custom_call.1} parent=1 // pred_fallthru
      _
    %358 = vsyncpa [#allocation3], 1
    %359 = vsyncpa [#allocation6], 1
    %360 = vsyncpa [#allocation9], 1
    %361 = vsyncpa [#allocation4], 1

</llo_original>
